<compile_context>
chip_gen: v5e
topology: v5e:2x2
jax: 0.10.0
libtpu: 0.0.40
codegen_flags: <defaults>
</compile_context>

<pallas_src>
import functools

import jax
import jax.numpy as jnp
from jax.experimental import pallas as pl
from jax.experimental.pallas import tpu as pltpu

_LANES = 128  # lane width: padded model axis and lane-dense output width


def _round_up(x, m):
    return ((x + m - 1) // m) * m


def ensemble_kernel(x_ref, wt_ref, b_ref, ew_ref, o_ref):
    # x: (TB, D_pad), wt: (D_pad, M_pad), b/ew: (1, M_pad) -> o: (TB, 128)
    # Per-model head logits; f32 MXU accumulation regardless of input dtype.
    logits = jnp.dot(x_ref[...], wt_ref[...],
                     preferred_element_type=jnp.float32) + b_ref[...]
    # Each member ends in Sigmoid; keep the math in f32.
    probs = jax.nn.sigmoid(logits)                               # (TB, M_pad)
    # Weighted sum over the (lane-padded) model axis: VPU mul + XLU lane
    # reduction.  Padded lanes carry ew == 0 so they contribute nothing.
    wsum = jnp.sum(probs * ew_ref[...], axis=-1, keepdims=True)  # (TB, 1)
    # Lane-dense store: broadcast across 128 lanes, wrapper slices column 0.
    o_ref[...] = jnp.broadcast_to(wsum, o_ref.shape).astype(o_ref.dtype)


@functools.partial(jax.jit, static_argnames=("use_weights",))
def ensemble_forward(x, W, b, ens_weights, use_weights=True):
    """Ensemble forward: weighted sum (or mean) of M sigmoid-head model outputs.

    x: (B, D) embeddings (f32 or bf16), W: (M, D) head weights, b: (M,) biases,
    ens_weights: (M,) ensemble combination weights.  Returns (B, 1) f32.
    """
    B, D = x.shape
    M = W.shape[0]

    if use_weights:
        ew = ens_weights.astype(jnp.float32)
    else:
        # outputs.mean(dim=0) == uniform-weighted sum
        ew = jnp.full((M,), 1.0 / M, dtype=jnp.float32)

    # Pad the model axis to a full lane width (padded lanes get zero ensemble
    # weight, so they never affect the result) and the contraction axis to a
    # multiple of 128 (zero columns contribute nothing to the matmul).
    M_pad = _round_up(M, _LANES)
    D_pad = _round_up(D, _LANES)

    ew2 = jnp.zeros((1, M_pad), jnp.float32).at[0, :M].set(ew)
    b2 = jnp.zeros((1, M_pad), jnp.float32).at[0, :M].set(b.astype(jnp.float32))
    # Pre-transpose head weights: (M, D) -> (D_pad, M_pad); matmul dtype
    # matches x so the MXU runs at its native (bf16-capable) rate.
    W_t = jnp.zeros((D_pad, M_pad), x.dtype).at[:D, :M].set(W.T.astype(x.dtype))

    if D_pad != D:
        x = jnp.pad(x, ((0, 0), (0, D_pad - D)))

    # Batch tile: multiple of 8 sublanes, capped at 512 rows (fits comfortably
    # under the 32 MiB default scoped VMEM with double buffering on all gens,
    # including v7x's 64 MiB physical VMEM, even for D ~ 2048).
    TB = min(512, _round_up(B, 8))
    B_pad = _round_up(B, TB)
    if B_pad != B:
        x = jnp.pad(x, ((0, B_pad - B), (0, 0)))

    itemsize = jnp.dtype(x.dtype).itemsize
    cost = pl.CostEstimate(
        flops=2 * B_pad * D_pad * M_pad + 4 * B_pad * M_pad,
        transcendentals=B_pad * M_pad,
        bytes_accessed=B_pad * D_pad * itemsize + D_pad * M_pad * itemsize
        + B_pad * _LANES * 4,
    )

    out = pl.pallas_call(
        ensemble_kernel,
        out_shape=jax.ShapeDtypeStruct((B_pad, _LANES), jnp.float32),
        grid_spec=pltpu.PrefetchScalarGridSpec(
            num_scalar_prefetch=0,
            grid=(B_pad // TB,),
            in_specs=[
                pl.BlockSpec((TB, D_pad), lambda i: (i, 0)),     # x (streamed)
                pl.BlockSpec((D_pad, M_pad), lambda i: (0, 0)),  # W^T (resident)
                pl.BlockSpec((1, M_pad), lambda i: (0, 0)),      # biases
                pl.BlockSpec((1, M_pad), lambda i: (0, 0)),      # ensemble wts
            ],
            out_specs=pl.BlockSpec((TB, _LANES), lambda i: (i, 0)),
        ),
        compiler_params=pltpu.CompilerParams(
            dimension_semantics=("parallel",)),
        cost_estimate=cost,
    )(x, W_t, b2, ew2)

    return out[:B, :1]


def ensemble_reference(x, W, b, ens_weights, use_weights=True):
    """Pure-JAX reference mirroring the PyTorch forward exactly."""
    # model(x) -> (B, 1) per model; stack along dim 0 -> (M, B, 1)
    outputs = jnp.stack(
        [jax.nn.sigmoid(x.astype(jnp.float32) @ W[m].astype(jnp.float32)[:, None]
                        + b[m]) for m in range(W.shape[0])],
        axis=0,
    )
    if use_weights:
        w = ens_weights.reshape(-1, 1, 1)
        return (outputs * w).sum(axis=0)
    return outputs.mean(axis=0)


if __name__ == "__main__":
    key = jax.random.PRNGKey(0)
    B, D, M = 8, 32, 3  # batch, embedding dim, number of ensemble members

    kx, kw, kb = jax.random.split(key, 3)
    x = jax.random.normal(kx, (B, D), dtype=jnp.float32)
    W = jax.random.normal(kw, (M, D), dtype=jnp.float32) * 0.1
    b = jax.random.normal(kb, (M,), dtype=jnp.float32) * 0.05
    ens_weights = jnp.array([0.5, 0.3, 0.2], dtype=jnp.float32)

    out = jax.block_until_ready(
        ensemble_forward(x, W, b, ens_weights, use_weights=True))
    ref = ensemble_reference(x, W, b, ens_weights, use_weights=True)
    assert out.shape == (B, 1)
    assert jnp.allclose(out, ref, atol=1e-5, rtol=1e-5)

    # Also exercise the use_weights=False (mean) path.
    out_mean = jax.block_until_ready(
        ensemble_forward(x, W, b, ens_weights, use_weights=False))
    ref_mean = ensemble_reference(x, W, b, ens_weights, use_weights=False)
    assert jnp.allclose(out_mean, ref_mean, atol=1e-5, rtol=1e-5)

    print("KERNEL_OK")
</pallas_src>

<mosaic_0001>
module attributes {stable_mosaic.version = 11 : i64} {
  func.func @ensemble_kernel(%arg0: i32, %arg1: memref<8x128xf32, #tpu.memory_space<vmem>>, %arg2: memref<128x128xf32, #tpu.memory_space<vmem>>, %arg3: memref<1x128xf32, #tpu.memory_space<vmem>>, %arg4: memref<1x128xf32, #tpu.memory_space<vmem>>, %arg5: memref<8x128xf32, #tpu.memory_space<vmem>>) attributes {dimension_semantics = [#tpu.dimension_semantics<parallel>], iteration_bounds = array<i64: 1>, scalar_prefetch = 0 : i64, scratch_operands = 0 : i64, tpu.core_type = #tpu.core_type<tc>, window_params = [{transform_indices = @transform_0, window_bounds = array<i64: 8, 128>}, {pipeline_mode = #tpu.pipeline_mode<synchronous>, transform_indices = @transform_1, window_bounds = array<i64: 128, 128>}, {pipeline_mode = #tpu.pipeline_mode<synchronous>, transform_indices = @transform_2, window_bounds = array<i64: 1, 128>}, {pipeline_mode = #tpu.pipeline_mode<synchronous>, transform_indices = @transform_3, window_bounds = array<i64: 1, 128>}, {transform_indices = @transform_4, window_bounds = array<i64: 8, 128>}]} {
    %c0 = arith.constant 0 : index
    %c0_0 = arith.constant 0 : index
    %0 = vector.load %arg1[%c0, %c0_0] : memref<8x128xf32, #tpu.memory_space<vmem>>, vector<8x128xf32>
    %c0_1 = arith.constant 0 : index
    %c0_2 = arith.constant 0 : index
    %1 = vector.load %arg2[%c0_1, %c0_2] : memref<128x128xf32, #tpu.memory_space<vmem>>, vector<128x128xf32>
    %cst = arith.constant dense<0.000000e+00> : vector<8x128xf32>
    %2 = tpu.matmul %0, %1, %cst {dimension_numbers = #tpu.dot_dimension_numbers<[1], [0], [0], [1], [0, 0, 1, 1], [], []>} : vector<8x128xf32>, vector<128x128xf32>, vector<8x128xf32> -> vector<8x128xf32>
    %c0_3 = arith.constant 0 : index
    %c0_4 = arith.constant 0 : index
    %3 = vector.load %arg3[%c0_3, %c0_4] : memref<1x128xf32, #tpu.memory_space<vmem>>, vector<1x128xf32>
    %4 = vector.broadcast %3 : vector<1x128xf32> to vector<8x128xf32>
    %5 = arith.addf %2, %4 : vector<8x128xf32>
    %6 = arith.negf %5 : vector<8x128xf32>
    %7 = math.exp %6 : vector<8x128xf32>
    %cst_5 = arith.constant 1.000000e+00 : f32
    %8 = vector.broadcast %cst_5 : f32 to vector<8x128xf32>
    %9 = arith.addf %8, %7 : vector<8x128xf32>
    %10 = arith.divf %8, %9 : vector<8x128xf32>
    %c0_6 = arith.constant 0 : index
    %c0_7 = arith.constant 0 : index
    %11 = vector.load %arg4[%c0_6, %c0_7] : memref<1x128xf32, #tpu.memory_space<vmem>>, vector<1x128xf32>
    %12 = vector.broadcast %11 : vector<1x128xf32> to vector<8x128xf32>
    %13 = arith.mulf %10, %12 : vector<8x128xf32>
    %cst_8 = arith.constant dense<0.000000e+00> : vector<8xf32>
    %14 = vector.multi_reduction <add>, %13, %cst_8 [1] : vector<8x128xf32> to vector<8xf32>
    %15 = vector.shape_cast %14 : vector<8xf32> to vector<8x1xf32>
    %16 = vector.shape_cast %15 : vector<8x1xf32> to vector<8x1xf32>
    %17 = vector.broadcast %16 : vector<8x1xf32> to vector<8x128xf32>
    %c0_9 = arith.constant 0 : index
    %c0_10 = arith.constant 0 : index
    %18 = vector.load %arg5[%c0_9, %c0_10] : memref<8x128xf32, #tpu.memory_space<vmem>>, vector<8x128xf32>
    tpu.vector_store %arg5[%c0_9, %c0_10], %17 {strides = array<i32>} : memref<8x128xf32, #tpu.memory_space<vmem>>, vector<8x128xf32>,
    return
  }
  func.func @transform_0(%arg0: i32) -> (i32, i32) {
    %c0_i32 = arith.constant 0 : i32
    %c0_i32_0 = arith.constant 0 : i32
    return %arg0, %c0_i32 : i32, i32
  }
  func.func @transform_1(%arg0: i32) -> (i32, i32) {
    %c0_i32 = arith.constant 0 : i32
    %c0_i32_0 = arith.constant 0 : i32
    %c0_i32_1 = arith.constant 0 : i32
    return %c0_i32, %c0_i32_0 : i32, i32
  }
  func.func @transform_2(%arg0: i32) -> (i32, i32) {
    %c0_i32 = arith.constant 0 : i32
    %c0_i32_0 = arith.constant 0 : i32
    %c0_i32_1 = arith.constant 0 : i32
    return %c0_i32, %c0_i32_0 : i32, i32
  }
  func.func @transform_3(%arg0: i32) -> (i32, i32) {
    %c0_i32 = arith.constant 0 : i32
    %c0_i32_0 = arith.constant 0 : i32
    %c0_i32_1 = arith.constant 0 : i32
    return %c0_i32, %c0_i32_0 : i32, i32
  }
  func.func @transform_4(%arg0: i32) -> (i32, i32) {
    %c0_i32 = arith.constant 0 : i32
    %c0_i32_0 = arith.constant 0 : i32
    return %arg0, %c0_i32 : i32, i32
  }
}

</mosaic_0001>

<llo_original>
// kernel: ensemble_forward.1
$region0: #{ensemble_forward.1}
  #allocation0 [shape = 'u32[]', space=smem, size = 0x4, offset = 0x4, fixed_abs, tag = 'smem constant byte address 0x4 - core index']
  #allocation1 [shape = 'u32[72,128]{1,0:T(1,128)}', space=vmem, size = 0x9000, scoped, tag = 'internal scratch']
  %s0 = inlined_call_operand.vmem [shape: f32[8,128], index: 0, kind: input, shape index: {}]
  %s1 = inlined_call_operand.vmem [shape: f32[128,128], index: 1, kind: input, shape index: {}]
  %s2 = inlined_call_operand.vmem [shape: f32[1,128], index: 2, kind: input, shape index: {}]
  %s3 = inlined_call_operand.vmem [shape: f32[1,128], index: 3, kind: input, shape index: {}]
  %s4 = inlined_call_operand.vmem [shape: f32[8,128], index: 4, kind: output, shape index: {}]
  %s5 = sld [smem:[#allocation0]]
  $region26: #{ensemble_forward.1} parent=0
    _
  %s7 = ssub.s32 1, %s5
  %s8 = scalar_select 0, %s7, %s5
  // Predicated region
  $region2: #{ensemble_forward.1} parent=0 // pred_check
    _
  $region3: #{ensemble_forward.1} parent=0 // pred_check_branch
    %10 = sbr.rel (0) target = $region5
  $region4: #{ensemble_forward.1} parent=0 // pred_region
    _
  $region5: #{ensemble_forward.1} parent=0 // pred_fallthru
    _
  // Predicated region
  $region6: #{ensemble_forward.1} parent=0 // pred_check
    _
  $region7: #{ensemble_forward.1} parent=0 // pred_check_branch
    %12 = sbr.rel (0) target = $region9
  $region8: #{ensemble_forward.1} parent=0 // pred_region
    _
  $region9: #{ensemble_forward.1} parent=0 // pred_fallthru
    _
  // Predicated region
  $region10: #{ensemble_forward.1} parent=0 // pred_check
    _
  $region11: #{ensemble_forward.1} parent=0 // pred_check_branch
    %14 = sbr.rel (0) target = $region13
  $region12: #{ensemble_forward.1} parent=0 // pred_region
    _
  $region13: #{ensemble_forward.1} parent=0 // pred_fallthru
    _
  // Predicated region
  $region14: #{ensemble_forward.1} parent=0 // pred_check
    _
  $region15: #{ensemble_forward.1} parent=0 // pred_check_branch
    %16 = sbr.rel (0) target = $region17
  $region16: #{ensemble_forward.1} parent=0 // pred_region
    _
  $region17: #{ensemble_forward.1} parent=0 // pred_fallthru
    _
  %v17 = vld [vmem:[%s0] sm:$0xff]
  %v18 = vld [vmem:[%s1] sm:$0xff]
  %v19 = vld [vmem:[%s1 + $0x8] sm:$0xff]
  %v20 = vld [vmem:[%s1 + $0x10] sm:$0xff]
  %v21 = vld [vmem:[%s1 + $0x18] sm:$0xff]
  %v22 = vld [vmem:[%s1 + $0x20] sm:$0xff]
  %v23 = vld [vmem:[%s1 + $0x28] sm:$0xff]
  %v24 = vld [vmem:[%s1 + $0x30] sm:$0xff]
  %v25 = vld [vmem:[%s1 + $0x38] sm:$0xff]
  %v26 = vld [vmem:[%s1 + $0x40] sm:$0xff]
  %v27 = vld [vmem:[%s1 + $0x48] sm:$0xff]
  %v28 = vld [vmem:[%s1 + $0x50] sm:$0xff]
  %v29 = vld [vmem:[%s1 + $0x58] sm:$0xff]
  %v30 = vld [vmem:[%s1 + $0x60] sm:$0xff]
  %v31 = vld [vmem:[%s1 + $0x68] sm:$0xff]
  %v32 = vld [vmem:[%s1 + $0x70] sm:$0xff]
  %v33 = vld [vmem:[%s1 + $0x78] sm:$0xff]
  %v34 = vld [vmem:[%s2] sm:$0x1]
  %v36 = vperm.slane %v34, 0
  %38 = vmatpush.msra.mxu0 %v33
  %39 = vmatpush.msra.mxu0 %v32
  %40 = vmatpush.msra.mxu0 %v31
  %41 = vmatpush.msra.mxu0 %v30
  %42 = vmatpush.msra.mxu0 %v29
  %43 = vmatpush.msra.mxu0 %v28
  %44 = vmatpush.msra.mxu0 %v27
  %45 = vmatpush.msra.mxu0 %v26
  %46 = vmatpush.msra.mxu0 %v25
  %47 = vmatpush.msra.mxu0 %v24
  %48 = vmatpush.msra.mxu0 %v23
  %49 = vmatpush.msra.mxu0 %v22
  %50 = vmatpush.msra.mxu0 %v21
  %51 = vmatpush.msra.mxu0 %v20
  %52 = vmatpush.msra.mxu0 %v19
  %53 = vmatpush.msra.mxu0 %v18
  %54 = vmatmul.f32.gmra.mxu0 %v17
  %v55 = vpop.f32.mrf.mxu0
  %v56 = vadd.f32 %v36, %v55
  %57 = vdwg.mxu0
  %v58 = vxor.u32 %v56, 2147483648
  %v59 = vmul.f32 %v58, 1.442695
  %v60 = vpow.pop %v59
  %v61 = vadd.f32 %v60, 1.0
  %v62 = vrcp.pop %v61
  %v63 = vmul.f32 %v61, %v62
  %v64 = vsub.f32 1.0, %v63
  %v65 = vmul.f32 %v62, %v64
  %v66 = vadd.f32 %v62, %v65
  %vm67 = vweird.f32 %v61
  %vm68 = vweird.f32 %v62
  %vm69 = vmor %vm67, %vm68
  %v70 = vsel %vm69, %v62, %v66
  %v71 = vand.u32 2147483647, %v61
  %vm72 = vcmp.eq.f32.partialorder %v71, 8.507059e+37
  %v73 = vand.u32 %v61, 2147483648
  %v74 = vor.u32 1.1754944e-38, %v73
  %v75 = vsel %vm72, %v74, %v70
  %v76 = vmul.f32 1.0, %v75
  %v77 = vld [vmem:[%s3] sm:$0x1]
  %v79 = vperm.slane %v77, 0
  %v81 = vmul.f32 %v76, %v79
  %82 = vadd.xlane.f32.xlu0 %v81
  %v83 = vpop.xlane.xlu0 %82
  %84 = vst [vmem:[%s4] sm:$0xff] %v83
  // Predicated region
  $region18: #{ensemble_forward.1} parent=0 // pred_check
    _
  $region19: #{ensemble_forward.1} parent=0 // pred_check_branch
    %86 = sbr.rel (0) target = $region21
  $region20: #{ensemble_forward.1} parent=0 // pred_region
    _
  $region21: #{ensemble_forward.1} parent=0 // pred_fallthru
    _
  // Predicated region
  $region22: #{ensemble_forward.1} parent=0 // pred_check
    _
  $region23: #{ensemble_forward.1} parent=0 // pred_check_branch
    %88 = sbr.rel (0) target = $region25
  $region24: #{ensemble_forward.1} parent=0 // pred_region
    _
  $region25: #{ensemble_forward.1} parent=0 // pred_fallthru
    _

</llo_original>
